<compile_context>
chip_gen: v5e
topology: v5e:2x2
jax: 0.10.0
libtpu: 0.0.40
codegen_flags: <defaults>
</compile_context>

<pallas_src>
import functools

import jax
import jax.numpy as jnp
from jax import lax
from jax.experimental import pallas as pl
from jax.experimental.pallas import tpu as pltpu


def _round_up(x, m):
    return (x + m - 1) // m * m


def _choose_tb(b, tb_max=512):
    """Batch tile: f32 sublane aligned, minimal padding, even step count if possible."""
    tb_max = max(8, _round_up(min(tb_max, max(b, 1)), 8))
    n_steps = -(-b // tb_max)
    if n_steps % 2 == 1 and b > 8:   # even #steps keeps both v7x TensorCores busy
        n_steps += 1
    return max(8, _round_up(-(-b // n_steps), 8))


def _encoder_kernel(acts_ref, fused_ref, out_ref, *, num_cols):
    """One batch tile: out = onehot_big(pre-offset actions) @ fused.

    acts_ref  : (TB, A+1)       int32  (already offset by a*K; last col = bias row id)
    fused_ref : (AK_pad, O_pad) f32    resident; row a*K+k = table[k] @ W_a^T, row A*K = bias
    out_ref   : (TB, O_pad)     f32
    """
    acts = acts_ref[...]                                   # (TB, A+1) int32
    tb = acts.shape[0]
    ak_pad = fused_ref.shape[0]

    # Big one-hot selector over the fused rows.  Agents (and the bias column) own
    # disjoint column ranges, so boolean OR of the per-agent indicators is exact.
    col = lax.broadcasted_iota(jnp.int32, (tb, ak_pad), 1)
    sel = col == acts[:, 0:1]
    for a in range(1, num_cols):
        sel = jnp.logical_or(sel, col == acts[:, a:a + 1])
    onehot = sel.astype(jnp.float32)                        # single final cast

    # Single lane-dense MXU matmul: exact 0/1 row selection + sum (bias included).
    out_ref[...] = jnp.dot(onehot, fused_ref[...], preferred_element_type=jnp.float32)


def prepare_params(table, weight, bias):
    """Fold embedding table and bias into the Linear weight (once, off the hot path).

    table  : (K, E)  f32  (identity when use_embedding=False, K == E == actions_max)
    weight : (mlp_out, A*E) f32  (PyTorch nn.Linear layout)
    bias   : (mlp_out,) f32

    Returns fused_p : (round_up(A*K+1,128), round_up(mlp_out,128)) f32 with
        fused_p[a*K + k, o] = sum_e table[k, e] * weight[o, a*E + e]
        fused_p[A*K,      o] = bias[o]
    """
    k, e = table.shape
    mlp_out, in_feats = weight.shape
    a = in_feats // e
    fused = jnp.einsum(
        "ke,oae->ako",
        table.astype(jnp.float32),
        weight.astype(jnp.float32).reshape(mlp_out, a, e),
        precision=lax.Precision.HIGHEST,
    ).reshape(a * k, mlp_out)

    ak_pad = _round_up(a * k + 1, 128)      # +1 row for the folded bias
    o_pad = _round_up(mlp_out, 128)
    fused_p = jnp.zeros((ak_pad, o_pad), jnp.float32)
    fused_p = fused_p.at[: a * k, :mlp_out].set(fused)
    fused_p = fused_p.at[a * k, :mlp_out].set(bias.astype(jnp.float32))
    return fused_p


def discrete_actions_encoder(actions, fused_p, *, actions_max, mlp_out, tb=None):
    """actions: (B, A) int32; fused_p from prepare_params; returns (B, mlp_out) f32."""
    b, a = actions.shape
    ak_pad, o_pad = fused_p.shape
    bias_col = a * actions_max

    # Pre-offset per-agent action ids and append the constant bias column so the
    # kernel loop is pure compares (no per-agent add, no separate bias input).
    offs = jnp.arange(a, dtype=jnp.int32) * jnp.int32(actions_max)
    acts_off = actions.astype(jnp.int32) + offs[None, :]
    acts_off = jnp.concatenate(
        [acts_off, jnp.full((b, 1), bias_col, jnp.int32)], axis=1)          # (B, A+1)

    tb = _choose_tb(b, tb_max=(tb or 512))
    b_pad = _round_up(b, tb)
    if b_pad != b:
        # Padded rows select row 0 + bias (harmless); their outputs are sliced off.
        acts_off = jnp.pad(acts_off, ((0, b_pad - b), (0, 0)))

    # Explicit VMEM budget (resident weight x2 conservatively, tiles x2, selector).
    vmem_bytes = (
        2 * ak_pad * o_pad * 4
        + 2 * tb * o_pad * 4
        + 2 * tb * (a + 1) * 4
        + tb * ak_pad * 4
    )
    vmem_limit = int(min(max(2 * vmem_bytes, 8 << 20), 100 << 20))

    kernel = functools.partial(_encoder_kernel, num_cols=a + 1)
    out = pl.pallas_call(
        kernel,
        out_shape=jax.ShapeDtypeStruct((b_pad, o_pad), jnp.float32),
        grid_spec=pltpu.PrefetchScalarGridSpec(
            num_scalar_prefetch=0,
            grid=(b_pad // tb,),
            in_specs=[
                pl.BlockSpec((tb, a + 1), lambda i: (i, 0)),      # batch-tiled actions
                pl.BlockSpec((ak_pad, o_pad), lambda i: (0, 0)),  # resident fused weight+bias
            ],
            out_specs=pl.BlockSpec((tb, o_pad), lambda i: (i, 0)),
        ),
        compiler_params=pltpu.CompilerParams(
            dimension_semantics=("parallel",),
            vmem_limit_bytes=vmem_limit,
        ),
    )(acts_off, fused_p)
    # NOTE: this slice is a separate XLA copy; keep mlp_out a multiple of 128 at the
    # model level (or consume the padded buffer directly) to avoid it in production.
    return out[:b, :mlp_out]


def init_params(key, actions_max, mlp_out, emb_size, num_agents, use_embedding):
    """Deterministic synthetic parameters matching the nn.Module's __init__ shapes."""
    k_emb, k_w, k_b = jax.random.split(key, 3)
    if use_embedding:
        # nn.Embedding default init: N(0, 1)
        table = jax.random.normal(k_emb, (actions_max, emb_size), jnp.float32)
        in_feats = emb_size * num_agents
    else:
        # one_hot(actions, actions_max) == embedding lookup into an identity table
        table = jnp.eye(actions_max, dtype=jnp.float32)
        in_feats = actions_max * num_agents
    bound = float(in_feats) ** -0.5
    # nn.Linear default init: U(-1/sqrt(in), 1/sqrt(in)), weight shape (out, in)
    weight = jax.random.uniform(k_w, (mlp_out, in_feats), jnp.float32, -bound, bound)
    bias = jax.random.uniform(k_b, (mlp_out,), jnp.float32, -bound, bound)
    return table, weight, bias


def reference_forward(actions, table, weight, bias, use_embedding, actions_max):
    """Pure-JAX replica of the PyTorch forward, for correctness checking."""
    if use_embedding:
        emb = table[actions]                                        # (B, A, E)
    else:
        emb = jax.nn.one_hot(actions, actions_max, dtype=jnp.float32)
    flat = emb.reshape(actions.shape[0], -1).astype(jnp.float32)    # (B, A*E)
    return jnp.dot(flat, weight.T, precision=lax.Precision.HIGHEST) + bias


if __name__ == "__main__":
    key = jax.random.PRNGKey(0)
    k_act, k_params = jax.random.split(key)

    batch = 48
    num_agents = 3
    actions_max = 8
    emb_size = 16
    mlp_out = 32

    actions = jax.random.randint(
        k_act, (batch, num_agents), 0, actions_max, dtype=jnp.int32)

    ok = True
    for use_embedding in (True, False):
        table, weight, bias = init_params(
            k_params, actions_max, mlp_out, emb_size, num_agents, use_embedding)
        fused_p = prepare_params(table, weight, bias)
        out = discrete_actions_encoder(
            actions, fused_p, actions_max=actions_max, mlp_out=mlp_out)
        out = jax.block_until_ready(out)
        ref = reference_forward(actions, table, weight, bias, use_embedding, actions_max)
        ok = ok and bool(jnp.allclose(out, ref, atol=1e-4, rtol=1e-4))

    if ok:
        print("KERNEL_OK")
    else:
        print("KERNEL_MISMATCH")
</pallas_src>

<mosaic_0001>
module attributes {stable_mosaic.version = 11 : i64} {
  func.func @_encoder_kernel(%arg0: i32, %arg1: memref<24x4xi32, #tpu.memory_space<vmem>>, %arg2: memref<128x128xf32, #tpu.memory_space<vmem>>, %arg3: memref<24x128xf32, #tpu.memory_space<vmem>>) attributes {dimension_semantics = [#tpu.dimension_semantics<parallel>], iteration_bounds = array<i64: 2>, scalar_prefetch = 0 : i64, scratch_operands = 0 : i64, tpu.core_type = #tpu.core_type<tc>, window_params = [{transform_indices = @transform_0, window_bounds = array<i64: 24, 4>}, {pipeline_mode = #tpu.pipeline_mode<synchronous>, transform_indices = @transform_1, window_bounds = array<i64: 128, 128>}, {transform_indices = @transform_2, window_bounds = array<i64: 24, 128>}]} {
    %c0 = arith.constant 0 : index
    %c0_0 = arith.constant 0 : index
    %0 = vector.load %arg1[%c0, %c0_0] : memref<24x4xi32, #tpu.memory_space<vmem>>, vector<24x4xi32>
    %1 = tpu.iota {dimensions = array<i32: 1>} : vector<24x128xi32>
    %2 = vector.extract_strided_slice %0 {offsets = [0, 0], sizes = [24, 1], strides = [1, 1]} : vector<24x4xi32> to vector<24x1xi32>
    %3 = vector.broadcast %2 : vector<24x1xi32> to vector<24x128xi32>
    %4 = arith.cmpi eq, %1, %3 : vector<24x128xi32>
    %5 = vector.extract_strided_slice %0 {offsets = [0, 1], sizes = [24, 1], strides = [1, 1]} : vector<24x4xi32> to vector<24x1xi32>
    %6 = vector.broadcast %5 : vector<24x1xi32> to vector<24x128xi32>
    %7 = arith.cmpi eq, %1, %6 : vector<24x128xi32>
    %8 = arith.ori %4, %7 : vector<24x128xi1>
    %9 = vector.extract_strided_slice %0 {offsets = [0, 2], sizes = [24, 1], strides = [1, 1]} : vector<24x4xi32> to vector<24x1xi32>
    %10 = vector.broadcast %9 : vector<24x1xi32> to vector<24x128xi32>
    %11 = arith.cmpi eq, %1, %10 : vector<24x128xi32>
    %12 = arith.ori %8, %11 : vector<24x128xi1>
    %13 = vector.extract_strided_slice %0 {offsets = [0, 3], sizes = [24, 1], strides = [1, 1]} : vector<24x4xi32> to vector<24x1xi32>
    %14 = vector.broadcast %13 : vector<24x1xi32> to vector<24x128xi32>
    %15 = arith.cmpi eq, %1, %14 : vector<24x128xi32>
    %16 = arith.ori %12, %15 : vector<24x128xi1>
    %17 = arith.extui %16 : vector<24x128xi1> to vector<24x128xi32>
    %18 = arith.sitofp %17 : vector<24x128xi32> to vector<24x128xf32>
    %c0_1 = arith.constant 0 : index
    %c0_2 = arith.constant 0 : index
    %19 = vector.load %arg2[%c0_1, %c0_2] : memref<128x128xf32, #tpu.memory_space<vmem>>, vector<128x128xf32>
    %cst = arith.constant dense<0.000000e+00> : vector<24x128xf32>
    %20 = tpu.matmul %18, %19, %cst {dimension_numbers = #tpu.dot_dimension_numbers<[1], [0], [0], [1], [0, 0, 1, 1], [], []>} : vector<24x128xf32>, vector<128x128xf32>, vector<24x128xf32> -> vector<24x128xf32>
    %c0_3 = arith.constant 0 : index
    %c0_4 = arith.constant 0 : index
    %21 = vector.load %arg3[%c0_3, %c0_4] : memref<24x128xf32, #tpu.memory_space<vmem>>, vector<24x128xf32>
    tpu.vector_store %arg3[%c0_3, %c0_4], %20 {strides = array<i32>} : memref<24x128xf32, #tpu.memory_space<vmem>>, vector<24x128xf32>,
    return
  }
  func.func @transform_0(%arg0: i32) -> (i32, i32) {
    %c0_i32 = arith.constant 0 : i32
    %c0_i32_0 = arith.constant 0 : i32
    return %arg0, %c0_i32 : i32, i32
  }
  func.func @transform_1(%arg0: i32) -> (i32, i32) {
    %c0_i32 = arith.constant 0 : i32
    %c0_i32_0 = arith.constant 0 : i32
    %c0_i32_1 = arith.constant 0 : i32
    return %c0_i32, %c0_i32_0 : i32, i32
  }
  func.func @transform_2(%arg0: i32) -> (i32, i32) {
    %c0_i32 = arith.constant 0 : i32
    %c0_i32_0 = arith.constant 0 : i32
    return %arg0, %c0_i32 : i32, i32
  }
}

</mosaic_0001>

<llo_original>
// kernel: tpu_custom_call.1
$region0: #{tpu_custom_call.1}
  #allocation0 [shape = 'u32[]', space=smem, size = 0x4, offset = 0x4, fixed_abs, tag = 'smem constant byte address 0x4 - core index']
  #allocation1 [shape = 'u32[72,128]{1,0:T(1,128)}', space=vmem, size = 0x9000, scoped, tag = 'internal scratch']
  %s0 = inlined_call_operand.vmem [shape: s32[48,4], index: 0, kind: input, shape index: {}]
  %s1 = inlined_call_operand.hbm [shape: f32[128,128], index: 1, kind: input, shape index: {}]
  %s2 = inlined_call_operand.hbm [shape: f32[48,128], index: 2, kind: output, shape index: {}]
  %s3 = sld [smem:[#allocation0]]
  $region45: #{tpu_custom_call.1} parent=0
    _
  %s5 = ssub.s32 1, %s3
  %s6 = scalar_select 0, %s5, %s3
  $region1: #{tpu_custom_call.1} parent=0
    #allocation2 [shape = 'u8[65536]{0}', space=vmem, size = 0x10000, scoped, tag = 'input window, operand 1, single buffered']
    #allocation3 [shape = 's32[2]{0}', space=sflag, size = 0x8, scoped, tag = 'scoped memory for tpu_custom_call.1']
    #allocation4 [shape = 's32[2]{0}', space=sflag, size = 0x8, scoped, tag = 'scoped memory for tpu_custom_call.1']
    #allocation5 [shape = 'u8[24576]{0}', space=vmem, size = 0x6000, scoped, tag = 'output window, operand 0']
    %7 = vsyncpa [#allocation3], 0
    %8 = vsyncpa [#allocation4], 0
    %s9 = scalar_lea.sflag [#allocation4], 1
    %10 = vsyncpa %s9, 0
    loop: start=0, step=1, limit=4
    $region2: #{tpu_custom_call.1} parent=1 // loop_pre_header
      _
    $region3: #{tpu_custom_call.1} parent=1 // loop_header
      %s12 = sphi 0, %s16
      %p13 = scmp.ge.s32.totalorder %s12, 4
      %s22 = sphi 0, %s24
      %s25 = sphi 0, %s22
      %s26 = sphi 0, %s25
      %s42 = sphi 0, %s26
      %s46 = sphi 0, %s46
      %s48 = sphi 0, %s46
      %s49 = sphi 0, %s48
      %s63 = sphi 0, %s49
      %s69 = sphi 0, %s71
      %s72 = sphi 0, %s69
      %s73 = sphi 0, %s72
      %s89 = sphi 0, %s73
    $region4: #{tpu_custom_call.1} parent=1 // loop_header_branch
      %15 = sbr.rel (%p13) target = $region8
    $region5: #{tpu_custom_call.1} parent=1 // loop_body
      %s17 = ssub.s32 %s12, 1
      %s18 = ssub.s32 %s12, 2
      %s19 = sadd.s32 %s12, 1
      %s20 = ssub.s32 %s12, %s19
      %p21 = scmp.eq.s32.totalorder %s20, 0
      %s23 = sadd.s32 %s22, 1
      %s24 = scalar_select %p21, %s22, %s23
      %p27 = pneg %p21
      %p28 = scmp.eq.s32.totalorder %s12, 1
      %p29 = por %p27, %p28
      %p30 = scmp.ne.s32.totalorder %s22, %s25
      %p31 = scmp.eq.s32.totalorder %s12, 0
      %p32 = por %p30, %p31
      %p33 = scmp.ne.s32.totalorder %s22, %s25
      %p34 = scmp.eq.s32.totalorder %s17, 1
      %p35 = por %p33, %p34
      %p36 = scmp.ne.s32.totalorder %s25, %s26
      %p37 = scmp.eq.s32.totalorder %s17, 0
      %p38 = por %p36, %p37
      %p39 = scmp.ne.s32.totalorder %s25, %s26
      %p40 = scmp.eq.s32.totalorder %s18, 1
      %p41 = por %p39, %p40
      %p43 = scmp.ne.s32.totalorder %s26, %s42
      %p44 = scmp.eq.s32.totalorder %s18, 0
      %p45 = por %p43, %p44
      %s47 = sadd.s32 %s46, 1
      %p50 = scmp.eq.s32.totalorder %s12, 1
      %p51 = scmp.ne.s32.totalorder %s46, %s48
      %p52 = scmp.eq.s32.totalorder %s12, 0
      %p53 = por %p51, %p52
      %p54 = scmp.ne.s32.totalorder %s46, %s48
      %p55 = scmp.eq.s32.totalorder %s17, 1
      %p56 = por %p54, %p55
      %p57 = scmp.ne.s32.totalorder %s48, %s49
      %p58 = scmp.eq.s32.totalorder %s17, 0
      %p59 = por %p57, %p58
      %p60 = scmp.ne.s32.totalorder %s48, %s49
      %p61 = scmp.eq.s32.totalorder %s18, 1
      %p62 = por %p60, %p61
      %p64 = scmp.ne.s32.totalorder %s49, %s63
      %p65 = scmp.eq.s32.totalorder %s18, 0
      %p66 = por %p64, %p65
      %s67 = ssub.s32 %s12, %s19
      %p68 = scmp.eq.s32.totalorder %s67, 0
      %s70 = sadd.s32 %s69, 1
      %s71 = scalar_select %p68, %s69, %s70
      %p74 = pneg %p68
      %p75 = scmp.eq.s32.totalorder %s12, 1
      %p76 = por %p74, %p75
      %p77 = scmp.ne.s32.totalorder %s69, %s72
      %p78 = scmp.eq.s32.totalorder %s12, 0
      %p79 = por %p77, %p78
      %p80 = scmp.ne.s32.totalorder %s69, %s72
      %p81 = scmp.eq.s32.totalorder %s17, 1
      %p82 = por %p80, %p81
      %p83 = scmp.ne.s32.totalorder %s72, %s73
      %p84 = scmp.eq.s32.totalorder %s17, 0
      %p85 = por %p83, %p84
      %p86 = scmp.ne.s32.totalorder %s72, %s73
      %p87 = scmp.eq.s32.totalorder %s18, 1
      %p88 = por %p86, %p87
      %p90 = scmp.ne.s32.totalorder %s73, %s89
      %p91 = scmp.eq.s32.totalorder %s18, 0
      %p92 = por %p90, %p91
      %p93 = scmp.le.s32.totalorder 1, %s12
      %p94 = scmp.lt.s32.totalorder %s12, 3
      %p95 = pnand %p93, %p94
      %p96 = pneg %p95
      // Predicated region
      $region9: #{tpu_custom_call.1} parent=5 // pred_check
        _
      $region10: #{tpu_custom_call.1} parent=5 // pred_check_branch
        %98 = sbr.rel (%p95) target = $region12
      $region11: #{tpu_custom_call.1} parent=5 // pred_region
        %s99 = ssub.s32 %s12, 1
        // Predicated region
        $region13: #{tpu_custom_call.1} parent=11 // pred_check
          %p100 = pneg %p59
        $region14: #{tpu_custom_call.1} parent=11 // pred_check_branch
          %102 = sbr.rel (%p100) target = $region16
        $region15: #{tpu_custom_call.1} parent=11 // pred_region
          %104 = vsyncadd [#allocation3], 0
          %s105 = sshll.u32 %s1, 4
          %s106 = int_to_ptr.hbm [resolvable:$true] %s105
          %s107 = sshll.u32 [#allocation2], 4
          %s108 = int_to_ptr.vmem [resolvable:$true] %s107
          %113 = dma.hbm_to_vmem [thread:$0]  %s106, 2048, %s108, [#allocation3], 128, 128, 8
        $region16: #{tpu_custom_call.1} parent=11 // pred_fallthru
          _
      $region12: #{tpu_custom_call.1} parent=5 // pred_fallthru
        _
      %p114 = scmp.lt.s32.totalorder %s12, 2
      // Predicated region
      $region17: #{tpu_custom_call.1} parent=5 // pred_check
        %p115 = pneg %p114
      $region18: #{tpu_custom_call.1} parent=5 // pred_check_branch
        %117 = sbr.rel (%p115) target = $region20
      $region19: #{tpu_custom_call.1} parent=5 // pred_region
        // Predicated region
        $region21: #{tpu_custom_call.1} parent=19 // pred_check
          %p118 = pneg %p32
        $region22: #{tpu_custom_call.1} parent=19 // pred_check_branch
          %120 = sbr.rel (%p118) target = $region24
        $region23: #{tpu_custom_call.1} parent=19 // pred_region
          %s121 = smul.u32 3, %s12
          %p122 = scmp.lt.s32.totalorder %s121, 5
          %s123 = scalar_select %p122, %s121, 5
          %s124 = smul.addr %s123, 8
          %s125 = scalar_lea.vmem %s0, %s124
          %s126 = smul.u32 3, %s12
        $region24: #{tpu_custom_call.1} parent=19 // pred_fallthru
          _
      $region20: #{tpu_custom_call.1} parent=5 // pred_fallthru
        _
      %p127 = scmp.le.s32.totalorder 1, %s12
      %p128 = scmp.lt.s32.totalorder %s12, 3
      %p129 = pnand %p127, %p128
      %p130 = pneg %p129
      // Predicated region
      $region25: #{tpu_custom_call.1} parent=5 // pred_check
        _
      $region26: #{tpu_custom_call.1} parent=5 // pred_check_branch
        %132 = sbr.rel (%p129) target = $region28
      $region27: #{tpu_custom_call.1} parent=5 // pred_region
        %s133 = ssub.s32 %s12, 1
        // Predicated region
        $region29: #{tpu_custom_call.1} parent=27 // pred_check
          %p134 = pneg %p59
        $region30: #{tpu_custom_call.1} parent=27 // pred_check_branch
          %136 = sbr.rel (%p134) target = $region32
        $region31: #{tpu_custom_call.1} parent=27 // pred_region
          %138 = dma.done [#allocation3], 2048
        $region32: #{tpu_custom_call.1} parent=27 // pred_fallthru
          _
        %s139 = smul.u32 3, %s17
        %p140 = scmp.lt.s32.totalorder %s139, 5
        %s141 = scalar_select %p140, %s139, 5
        %s142 = smul.addr %s141, 8
        %s143 = scalar_lea.vmem %s0, %s142
        %p144 = pneg %p38
        %p145 = pneg %p35
        %p146 = pneg %p59
        %p147 = pneg %p56
        %p148 = pneg %p85
        %p149 = pneg %p82
        %s150 = sand.u32 %s72, 1
        %s151 = scalar_lea.sflag [#allocation4], %s150
        %s152 = sand.u32 %s72, 1
        %s153 = smul.addr %s152, 24
        %s154 = scalar_lea.vmem [#allocation5], %s153
        %s155 = smul.u32 3, %s17
        %p156 = scmp.lt.s32.totalorder %s155, 5
        %s157 = scalar_select %p156, %s155, 5
        %s158 = smul.addr %s157, 8
        %s159 = scalar_lea.vmem %s0, %s158
        %s160 = smul.u32 3, %s17
        %s161 = smul.u32 3, %s17
        %v162 = vld [vmem:[%s159] sm:$0xff]
        %v163 = vld [vmem:[%s159 + $0x8] sm:$0xff]
        %v164 = vld [vmem:[%s159 + $0x10] sm:$0xff]
        %v165 = vlaneseq
        %v166 = vand.u32 %v165, 127
        %167 = vset.pattern.permute.xlu0 0
        %168 = vperm.xlu0 %167, %v162
        %v169 = vpop.permute.xlu0 %168
        %170 = vset.pattern.permute.xlu0 0
        %171 = vperm.xlu0 %170, %v163
        %v172 = vpop.permute.xlu0 %171
        %173 = vset.pattern.permute.xlu0 0
        %174 = vperm.xlu0 %173, %v164
        %v175 = vpop.permute.xlu0 %174
        %vm176 = vcmp.eq.s32.totalorder %v166, %v169
        %vm177 = vcmp.eq.s32.totalorder %v166, %v172
        %vm178 = vcmp.eq.s32.totalorder %v166, %v175
        %179 = vset.pattern.permute.xlu0 1
        %180 = vperm.xlu0 %179, %v162
        %v181 = vpop.permute.xlu0 %180
        %182 = vset.pattern.permute.xlu0 1
        %183 = vperm.xlu0 %182, %v163
        %v184 = vpop.permute.xlu0 %183
        %185 = vset.pattern.permute.xlu0 1
        %186 = vperm.xlu0 %185, %v164
        %v187 = vpop.permute.xlu0 %186
        %vm188 = vcmp.eq.s32.totalorder %v166, %v181
        %vm189 = vcmp.eq.s32.totalorder %v166, %v184
        %vm190 = vcmp.eq.s32.totalorder %v166, %v187
        %vm191 = vmor %vm176, %vm188
        %vm192 = vmor %vm177, %vm189
        %vm193 = vmor %vm178, %vm190
        %194 = vset.pattern.permute.xlu0 2
        %195 = vperm.xlu0 %194, %v162
        %v196 = vpop.permute.xlu0 %195
        %197 = vset.pattern.permute.xlu0 2
        %198 = vperm.xlu0 %197, %v163
        %v199 = vpop.permute.xlu0 %198
        %200 = vset.pattern.permute.xlu0 2
        %201 = vperm.xlu0 %200, %v164
        %v202 = vpop.permute.xlu0 %201
        %vm203 = vcmp.eq.s32.totalorder %v166, %v196
        %vm204 = vcmp.eq.s32.totalorder %v166, %v199
        %vm205 = vcmp.eq.s32.totalorder %v166, %v202
        %vm206 = vmor %vm191, %vm203
        %vm207 = vmor %vm192, %vm204
        %vm208 = vmor %vm193, %vm205
        %209 = vset.pattern.permute.xlu0 3
        %210 = vperm.xlu0 %209, %v162
        %v211 = vpop.permute.xlu0 %210
        %212 = vset.pattern.permute.xlu0 3
        %213 = vperm.xlu0 %212, %v163
        %v214 = vpop.permute.xlu0 %213
        %215 = vset.pattern.permute.xlu0 3
        %216 = vperm.xlu0 %215, %v164
        %v217 = vpop.permute.xlu0 %216
        %vm218 = vcmp.eq.s32.totalorder %v166, %v211
        %vm219 = vcmp.eq.s32.totalorder %v166, %v214
        %vm220 = vcmp.eq.s32.totalorder %v166, %v217
        %vm221 = vmor %vm206, %vm218
        %vm222 = vmor %vm207, %vm219
        %vm223 = vmor %vm208, %vm220
        %v224 = vsel %vm221, 1, 0
        %v225 = vsel %vm222, 1, 0
        %v226 = vsel %vm223, 1, 0
        %v227 = vcvt.s32.f32 %v224
        %v228 = vcvt.s32.f32 %v225
        %v229 = vcvt.s32.f32 %v226
        %v230 = vld [vmem:[#allocation2] sm:$0xff]
        %v231 = vld [vmem:[#allocation2 + $0x8] sm:$0xff]
        %v232 = vld [vmem:[#allocation2 + $0x10] sm:$0xff]
        %v233 = vld [vmem:[#allocation2 + $0x18] sm:$0xff]
        %v234 = vld [vmem:[#allocation2 + $0x20] sm:$0xff]
        %v235 = vld [vmem:[#allocation2 + $0x28] sm:$0xff]
        %v236 = vld [vmem:[#allocation2 + $0x30] sm:$0xff]
        %v237 = vld [vmem:[#allocation2 + $0x38] sm:$0xff]
        %v238 = vld [vmem:[#allocation2 + $0x40] sm:$0xff]
        %v239 = vld [vmem:[#allocation2 + $0x48] sm:$0xff]
        %v240 = vld [vmem:[#allocation2 + $0x50] sm:$0xff]
        %v241 = vld [vmem:[#allocation2 + $0x58] sm:$0xff]
        %v242 = vld [vmem:[#allocation2 + $0x60] sm:$0xff]
        %v243 = vld [vmem:[#allocation2 + $0x68] sm:$0xff]
        %v244 = vld [vmem:[#allocation2 + $0x70] sm:$0xff]
        %v245 = vld [vmem:[#allocation2 + $0x78] sm:$0xff]
        %246 = vmatpush.msra.mxu0 %v245
        %247 = vmatpush.msra.mxu0 %v244
        %248 = vmatpush.msra.mxu0 %v243
        %249 = vmatpush.msra.mxu0 %v242
        %250 = vmatpush.msra.mxu0 %v241
        %251 = vmatpush.msra.mxu0 %v240
        %252 = vmatpush.msra.mxu0 %v239
        %253 = vmatpush.msra.mxu0 %v238
        %254 = vmatpush.msra.mxu0 %v237
        %255 = vmatpush.msra.mxu0 %v236
        %256 = vmatpush.msra.mxu0 %v235
        %257 = vmatpush.msra.mxu0 %v234
        %258 = vmatpush.msra.mxu0 %v233
        %259 = vmatpush.msra.mxu0 %v232
        %260 = vmatpush.msra.mxu0 %v231
        %261 = vmatpush.msra.mxu0 %v230
        %262 = vmatmul.f32.gmra.mxu0 %v227
        %v263 = vpop.f32.mrf.mxu0
        %v264 = vadd.f32 0.0, %v263
        %265 = vmatmul.f32.gmra.mxu0 %v228
        %v266 = vpop.f32.mrf.mxu0
        %v267 = vadd.f32 0.0, %v266
        %268 = vmatmul.f32.gmra.mxu0 %v229
        %v269 = vpop.f32.mrf.mxu0
        %v270 = vadd.f32 0.0, %v269
        %271 = vdwg.mxu0
        %272 = vst [vmem:[%s154] sm:$0xff] %v264
        %273 = vst [vmem:[%s154 + $0x8] sm:$0xff] %v267
        %274 = vst [vmem:[%s154 + $0x10] sm:$0xff] %v270
        %s275 = sand.u32 %s72, 1
        %s276 = scalar_lea.sflag [#allocation4], %s275
        %s277 = sand.u32 %s72, 1
        %s278 = smul.addr %s277, 24
        %s279 = scalar_lea.vmem [#allocation5], %s278
        // Predicated region
        $region33: #{tpu_custom_call.1} parent=27 // pred_check
          %p280 = pneg %p82
        $region34: #{tpu_custom_call.1} parent=27 // pred_check_branch
          %282 = sbr.rel (%p280) target = $region36
        $region35: #{tpu_custom_call.1} parent=27 // pred_region
          %s283 = smul.u32 3, %s17
          %285 = vsyncadd %s276, 0
          %s286 = smul.addr %s283, 8
          %s287 = scalar_lea.hbm %s2, %s286
          %s288 = sshll.u32 %s279, 4
          %s289 = int_to_ptr.vmem [resolvable:$true] %s288
          %s290 = sshll.u32 %s287, 4
          %s291 = int_to_ptr.hbm [resolvable:$true] %s290
          %296 = dma.vmem_to_hbm [thread:$0]  %s289, 384, %s291, %s276, 128, 128, 8
        $region36: #{tpu_custom_call.1} parent=27 // pred_fallthru
          _
      $region28: #{tpu_custom_call.1} parent=5 // pred_fallthru
        _
      %p297 = scmp.le.s32.totalorder 2, %s12
      // Predicated region
      $region37: #{tpu_custom_call.1} parent=5 // pred_check
        %p298 = pneg %p297
      $region38: #{tpu_custom_call.1} parent=5 // pred_check_branch
        %300 = sbr.rel (%p298) target = $region40
      $region39: #{tpu_custom_call.1} parent=5 // pred_region
        %s301 = ssub.s32 %s12, 2
        // Predicated region
        $region41: #{tpu_custom_call.1} parent=39 // pred_check
          %p302 = pneg %p88
        $region42: #{tpu_custom_call.1} parent=39 // pred_check_branch
          %304 = sbr.rel (%p302) target = $region44
        $region43: #{tpu_custom_call.1} parent=39 // pred_region
          %s305 = sand.u32 %s73, 1
          %s306 = scalar_lea.sflag [#allocation4], %s305
          %s307 = sand.u32 %s73, 1
          %s308 = smul.addr %s307, 24
          %s309 = scalar_lea.vmem [#allocation5], %s308
          %311 = dma.done %s306, 384
        $region44: #{tpu_custom_call.1} parent=39 // pred_fallthru
          _
      $region40: #{tpu_custom_call.1} parent=5 // pred_fallthru
        _
    $region6: #{tpu_custom_call.1} parent=1 // loop_footer
      %s16 = sadd.s32 1, %s12
    $region7: #{tpu_custom_call.1} parent=1 // loop_footer_branch
      %11 = sbr.rel target = $region3
    $region8: #{tpu_custom_call.1} parent=1 // loop_exit
      _
    %312 = vsyncpa [#allocation3], 1
    %s313 = scalar_lea.sflag [#allocation3], 1
    %314 = vsyncpa %s313, 1
    %315 = vsyncpa [#allocation4], 1
    %s316 = scalar_lea.sflag [#allocation4], 1
    %317 = vsyncpa %s316, 1

</llo_original>
